<compile_context>
chip_gen: v5e
topology: v5e:2x2
jax: 0.10.0
libtpu: 0.0.40
codegen_flags: <defaults>
</compile_context>

<pallas_src>
import jax
import jax.numpy as jnp
from jax.experimental import pallas as pl
from jax.experimental.pallas import tpu as pltpu  # noqa: F401  (TPU backend)

_LANES = 128   # lane-dense padded width (first 9 = real, next 9 = imag, rest 0)
_TAPS = 9      # 3x3 spatial taps
_SUBLANES = 8  # f32 sublane granularity


def _pattern_bank_kernel(coeff_ref, out_ref):
    # coeff_ref: (K_pad, 128) f32 -- lanes [0:9] real, [9:18] imag, rest zero.
    c = coeff_ref[...]
    # Per-pattern energy. Padded lanes are zero, so summing all 128 lanes is
    # exactly sum(real^2 + imag^2) over the 3x3 taps.
    energy = jnp.sum(c * c, axis=1, keepdims=True)            # (K_pad, 1)
    inv = jax.lax.rsqrt(jnp.maximum(energy, 1e-8))             # exact rsqrt (EUP)
    # Zero rows (background + sublane padding) stay exactly zero: 0 * 1e4 = 0.
    out_ref[...] = c * inv                                     # aligned full-block store


def pattern_bank_forward(coeff_real, coeff_imag):
    """coeff_real, coeff_imag: (K, 3, 3) f32  ->  P: (K+1, 3, 3) complex64."""
    K = coeff_real.shape[0]
    K_total = K + 1
    K_pad = ((K_total + _SUBLANES - 1) // _SUBLANES) * _SUBLANES  # sublane-aligned rows

    r2 = coeff_real.reshape(K, _TAPS).astype(jnp.float32)
    i2 = coeff_imag.reshape(K, _TAPS).astype(jnp.float32)

    # Pack real|imag on the lane axis; row 0 = frozen zero background pattern;
    # rows beyond K_total (if any) are zero sublane padding. XLA fuses this.
    packed = jnp.zeros((K_pad, _LANES), dtype=jnp.float32)
    packed = packed.at[1:K_total, 0:_TAPS].set(r2)
    packed = packed.at[1:K_total, _TAPS:2 * _TAPS].set(i2)

    cost = pl.CostEstimate(
        flops=3 * K_pad * _LANES,          # square + reduce + scale
        transcendentals=K_pad,             # one rsqrt per row
        bytes_accessed=2 * 4 * K_pad * _LANES,
    )

    out = pl.pallas_call(
        _pattern_bank_kernel,
        out_shape=jax.ShapeDtypeStruct((K_pad, _LANES), jnp.float32),
        in_specs=[pl.BlockSpec((K_pad, _LANES), lambda: (0, 0))],
        out_specs=pl.BlockSpec((K_pad, _LANES), lambda: (0, 0)),
        cost_estimate=cost,
    )(packed)

    # Unpack: row 0 is already the zero background, rows 1..K are unit-norm.
    real = out[:K_total, 0:_TAPS].reshape(K_total, 3, 3)
    imag = out[:K_total, _TAPS:2 * _TAPS].reshape(K_total, 3, 3)
    return jax.lax.complex(real, imag)


def _reference_forward(coeff_real, coeff_imag):
    """Pure-JAX reference mirroring the PyTorch module."""
    mag2 = coeff_real ** 2 + coeff_imag ** 2
    norm = jnp.sqrt(jnp.clip(jnp.sum(mag2, axis=(1, 2), keepdims=True), 1e-8, None))
    r = coeff_real / norm
    i = coeff_imag / norm
    zeros = jnp.zeros((1, 3, 3), dtype=r.dtype)
    real = jnp.concatenate([zeros, r], axis=0)
    imag = jnp.concatenate([zeros, i], axis=0)
    return real + 1j * imag


if __name__ == "__main__":
    K = 7  # K_total = K + 1 = 8 patterns

    key = jax.random.PRNGKey(0)
    k_r, k_i = jax.random.split(key)
    # Deterministic parameter init, matching 0.01 * randn(K, 3, 3)
    coeff_real = 0.01 * jax.random.normal(k_r, (K, 3, 3), dtype=jnp.float32)
    coeff_imag = 0.01 * jax.random.normal(k_i, (K, 3, 3), dtype=jnp.float32)

    P = pattern_bank_forward(coeff_real, coeff_imag)
    P = jax.block_until_ready(P)

    # Sanity checks against the pure-JAX reference.
    P_ref = _reference_forward(coeff_real, coeff_imag)
    assert P.shape == (K + 1, 3, 3)
    assert P.dtype == jnp.complex64
    assert jnp.allclose(P[0], 0.0)
    energies = jnp.sum(jnp.abs(P[1:]) ** 2, axis=(1, 2))
    assert jnp.allclose(energies, 1.0, atol=1e-5)
    assert jnp.allclose(P.real, P_ref.real, atol=1e-6)
    assert jnp.allclose(P.imag, P_ref.imag, atol=1e-6)

    print("KERNEL_OK")
</pallas_src>

<mosaic_0001>
module attributes {stable_mosaic.version = 11 : i64} {
  func.func @_pattern_bank_kernel(%arg0: memref<8x128xf32, #tpu.memory_space<vmem>>, %arg1: memref<8x128xf32, #tpu.memory_space<vmem>>) attributes {dimension_semantics = [], scalar_prefetch = 0 : i64, scratch_operands = 0 : i64, tpu.core_type = #tpu.core_type<tc>} {
    %c0 = arith.constant 0 : index
    %c0_0 = arith.constant 0 : index
    %0 = vector.load %arg0[%c0, %c0_0] : memref<8x128xf32, #tpu.memory_space<vmem>>, vector<8x128xf32>
    %1 = arith.mulf %0, %0 : vector<8x128xf32>
    %cst = arith.constant dense<0.000000e+00> : vector<8xf32>
    %2 = vector.multi_reduction <add>, %1, %cst [1] : vector<8x128xf32> to vector<8xf32>
    %3 = vector.shape_cast %2 : vector<8xf32> to vector<8x1xf32>
    %cst_1 = arith.constant 9.99999993E-9 : f32
    %4 = vector.broadcast %cst_1 : f32 to vector<8x1xf32>
    %5 = arith.maximumf %3, %4 : vector<8x1xf32>
    %6 = math.rsqrt %5 : vector<8x1xf32>
    %7 = vector.broadcast %6 : vector<8x1xf32> to vector<8x128xf32>
    %8 = arith.mulf %0, %7 : vector<8x128xf32>
    %c0_2 = arith.constant 0 : index
    %c0_3 = arith.constant 0 : index
    %9 = vector.load %arg1[%c0_2, %c0_3] : memref<8x128xf32, #tpu.memory_space<vmem>>, vector<8x128xf32>
    tpu.vector_store %arg1[%c0_2, %c0_3], %8 {strides = array<i32>} : memref<8x128xf32, #tpu.memory_space<vmem>>, vector<8x128xf32>,
    return
  }
}

</mosaic_0001>

<llo_original>
// kernel: tpu_custom_call.1
$region0: #{tpu_custom_call.1}
  #allocation0 [shape = 'u32[]', space=smem, size = 0x4, offset = 0x4, fixed_abs, tag = 'smem constant byte address 0x4 - core index']
  #allocation1 [shape = 'u32[72,128]{1,0:T(1,128)}', space=vmem, size = 0x9000, scoped, tag = 'internal scratch']
  %s0 = inlined_call_operand.hbm [shape: f32[8,128], index: 0, kind: input, shape index: {}]
  %s1 = inlined_call_operand.hbm [shape: f32[8,128], index: 1, kind: output, shape index: {}]
  %s2 = sld [smem:[#allocation0]]
  $region18: #{tpu_custom_call.1} parent=0
    _
  %s4 = ssub.s32 1, %s2
  %s5 = scalar_select 0, %s4, %s2
  $region1: #{tpu_custom_call.1} parent=0
    #allocation2 [shape = 'u8[4096]{0}', space=vmem, size = 0x1000, scoped, tag = 'input window, operand 0, single buffered']
    #allocation3 [shape = 's32[1]{0}', space=sflag, size = 0x4, scoped, tag = 'scoped memory for tpu_custom_call.1']
    #allocation4 [shape = 's32[1]{0}', space=sflag, size = 0x4, scoped, tag = 'scoped memory for tpu_custom_call.1']
    #allocation5 [shape = 'u8[4096]{0}', space=vmem, size = 0x1000, scoped, tag = 'output window, operand 0, single buffered']
    %6 = vsyncpa [#allocation3], 0
    %7 = vsyncpa [#allocation4], 0
    // Predicated region
    $region2: #{tpu_custom_call.1} parent=1 // pred_check
      _
    $region3: #{tpu_custom_call.1} parent=1 // pred_check_branch
      %9 = sbr.rel (0) target = $region5
    $region4: #{tpu_custom_call.1} parent=1 // pred_region
      %11 = vsyncadd [#allocation3], 0
      %s13 = sshll.u32 %s0, 4
      %s14 = int_to_ptr.hbm [resolvable:$true] %s13
      %s15 = sshll.u32 [#allocation2], 4
      %s16 = int_to_ptr.vmem [resolvable:$true] %s15
      %18 = dma.hbm_to_vmem [thread:$0]  %s14, 128, %s16, [#allocation3]
    $region5: #{tpu_custom_call.1} parent=1 // pred_fallthru
      _
    // Predicated region
    $region6: #{tpu_custom_call.1} parent=1 // pred_check
      _
    $region7: #{tpu_custom_call.1} parent=1 // pred_check_branch
      %20 = sbr.rel (0) target = $region9
    $region8: #{tpu_custom_call.1} parent=1 // pred_region
      %22 = dma.done [#allocation3], 128
    $region9: #{tpu_custom_call.1} parent=1 // pred_fallthru
      _
    %v23 = vld [vmem:[#allocation2] sm:$0xff]
    %v24 = vmul.f32 %v23, %v23
    %25 = vadd.xlane.f32.xlu0 %v24
    %v26 = vpop.xlane.xlu0 %25
    %v27 = vmax.f32 %v26, 1e-08
    %v28 = vrsqrt.pop %v27
    %v29 = vmul.f32 %v28, %v27
    %v30 = vmul.f32 %v29, %v28
    %v31 = vmul.f32 0.5, %v30
    %v32 = vsub.f32 1.5, %v31
    %v33 = vmul.f32 %v28, %v32
    %vm34 = vweird.f32 %v27
    %vm35 = vweird.f32 %v28
    %vm36 = vmor %vm34, %vm35
    %v37 = vsel %vm36, %v28, %v33
    %v38 = vmul.f32 %v23, %v37
    %39 = vst [vmem:[#allocation5] sm:$0xff] %v38
    // Predicated region
    $region10: #{tpu_custom_call.1} parent=1 // pred_check
      _
    $region11: #{tpu_custom_call.1} parent=1 // pred_check_branch
      %41 = sbr.rel (0) target = $region13
    $region12: #{tpu_custom_call.1} parent=1 // pred_region
      %43 = vsyncadd [#allocation4], 0
      %s45 = sshll.u32 [#allocation5], 4
      %s46 = int_to_ptr.vmem [resolvable:$true] %s45
      %s47 = sshll.u32 %s1, 4
      %s48 = int_to_ptr.hbm [resolvable:$true] %s47
      %50 = dma.vmem_to_hbm [thread:$0]  %s46, 128, %s48, [#allocation4]
    $region13: #{tpu_custom_call.1} parent=1 // pred_fallthru
      _
    // Predicated region
    $region14: #{tpu_custom_call.1} parent=1 // pred_check
      _
    $region15: #{tpu_custom_call.1} parent=1 // pred_check_branch
      %52 = sbr.rel (0) target = $region17
    $region16: #{tpu_custom_call.1} parent=1 // pred_region
      %54 = dma.done [#allocation4], 128
    $region17: #{tpu_custom_call.1} parent=1 // pred_fallthru
      _
    %55 = vsyncpa [#allocation3], 1
    %56 = vsyncpa [#allocation4], 1

</llo_original>
